<compile_context>
chip_gen: v7x
topology: tpu7x:2x2x1
jax: 0.10.0
libtpu: 0.0.40
codegen_flags: <defaults>
</compile_context>

<pallas_src>
import functools

import numpy as np
import jax
import jax.numpy as jnp
from jax.experimental import pallas as pl
from jax.experimental.pallas import tpu as pltpu


_LAPLACE_FILTER = np.array([[0.0, -1.0, 0.0],
                            [-1.0, 4.0, -1.0],
                            [0.0, -1.0, 0.0]], dtype=np.float32)

_TILE_B = 1024       # rows per grid step in the tiled path (multiple of 256)
_SMALL_ROWS = 1024   # <= this many grouped rows -> single gridless kernel
_TARGET_LANES = 256  # aim for ~this many lanes after group folding


def _laplace_operator_np(k1: int, k2: int, pad: int) -> np.ndarray:
    """Dense operator L with (x.reshape(B, k1*k2) @ L) == 3x3 Laplace
    cross-correlation of each (k1,k2) filter (zero padding `pad`), flattened
    over output spatial positions."""
    h_out = k1 + 2 * pad - 2
    w_out = k2 + 2 * pad - 2
    assert h_out > 0 and w_out > 0, "filter too small for this padding"
    L = np.zeros((k1 * k2, h_out * w_out), dtype=np.float32)
    for oi in range(h_out):
        for oj in range(w_out):
            po = oi * w_out + oj
            for di in range(3):
                for dj in range(3):
                    ii = oi - pad + di
                    jj = oj - pad + dj
                    if 0 <= ii < k1 and 0 <= jj < k2:
                        L[ii * k2 + jj, po] += _LAPLACE_FILTER[di, dj]
    return L


@functools.lru_cache(maxsize=None)
def _grouped_operator(k1: int, k2: int, pad: int, g: int):
    """Block-diagonal kron(I_g, L) operator with its output axis zero-padded to
    a multiple of 128 lanes.  Returns (numpy operator, true K_out per filter)."""
    L = _laplace_operator_np(k1, k2, pad)
    k_out_true = L.shape[1]
    Lg = np.kron(np.eye(g, dtype=np.float32), L)           # (g*K, g*K_out)
    cols = Lg.shape[1]
    cols_pad = max(128, ((cols + 127) // 128) * 128)
    if cols_pad != cols:
        Lg = np.pad(Lg, ((0, 0), (0, cols_pad - cols)))
    return Lg, k_out_true


def _pick_group(B: int, K: int, target: int = _TARGET_LANES) -> int:
    """Largest divisor g of B with g*K <= target (lane-dense group folding)."""
    gmax = max(1, min(B, target // max(K, 1)))
    for g in range(gmax, 0, -1):
        if B % g == 0:
            return g
    return 1


def _laplace_small_kernel(x_ref, l_ref, o_ref, *, ratio_scale: float):
    """Gridless path.  x_ref: (Bg, Kg) grouped filters, l_ref: (Kg, Kout_pad)
    operator, o_ref: (1,1) SMEM scalar = ratio_scale * sum(lap^2) / sum(x^2)."""
    x = x_ref[...]
    lap = jnp.dot(x, l_ref[...], preferred_element_type=jnp.float32,
                  precision=jax.lax.Precision.HIGHEST)
    num = jnp.sum(lap * lap)
    xf = x.astype(jnp.float32)
    den = jnp.sum(xf * xf)
    o_ref[0, 0] = (ratio_scale * num / den).astype(jnp.float32)


def _laplace_tiled_kernel(x_ref, l_ref, o_ref):
    """Tiled path.  Each grid step writes its partial sums into a lane-dense
    (1, 8, 128) output row: [0,0,0] = sum(lap^2), [0,0,1] = sum(x^2)."""
    x = x_ref[...]
    lap = jnp.dot(x, l_ref[...], preferred_element_type=jnp.float32,
                  precision=jax.lax.Precision.HIGHEST)
    num = jnp.sum(lap * lap)
    xf = x.astype(jnp.float32)
    den = jnp.sum(xf * xf)
    col = jax.lax.broadcasted_iota(jnp.int32, (8, 128), 1)
    blk = jnp.where(col == 0, num, jnp.where(col == 1, den, jnp.float32(0.0)))
    o_ref[...] = blk[None].astype(o_ref.dtype)


@functools.partial(jax.jit, static_argnames=("avg", "padding"))
def laplace_l2norm(x, avg=False, padding=None):
    """Pallas TPU forward of LaplaceL2norm: agg(laplace(x)^2) / agg(x^2)."""
    oc, ic, k1, k2 = x.shape
    pad = (_LAPLACE_FILTER.shape[-1] // 2) if padding is None else padding
    B, K = oc * ic, k1 * k2

    g = _pick_group(B, K)
    Lg_np, k_out_true = _grouped_operator(k1, k2, pad, g)
    Kg, Kout_pad = Lg_np.shape
    Lg = jnp.asarray(Lg_np)

    # mean/mean and sum/sum differ only by the element-count ratio, folded in
    # as a compile-time constant (uses the TRUE, unpadded output count).
    ratio_scale = float(K / k_out_true) if avg else 1.0

    Bg = B // g
    x2d = x.reshape(Bg, Kg)          # pure reshape; original dtype preserved

    if Bg <= _SMALL_ROWS:
        # Small bank: no grid, no pipeline scaffolding; scalar out via SMEM.
        out = pl.pallas_call(
            functools.partial(_laplace_small_kernel, ratio_scale=ratio_scale),
            out_shape=jax.ShapeDtypeStruct((1, 1), jnp.float32),
            in_specs=[pl.BlockSpec(memory_space=pltpu.MemorySpace.VMEM),
                      pl.BlockSpec(memory_space=pltpu.MemorySpace.VMEM)],
            out_specs=pl.BlockSpec(memory_space=pltpu.MemorySpace.SMEM),
        )(x2d, Lg)
        return out[0, 0]

    # Large bank: stream grouped rows through a parallel grid; zero-pad the row
    # axis (zero rows contribute exactly 0 to both sums).
    num_tiles = pl.cdiv(Bg, _TILE_B)
    B_padded = num_tiles * _TILE_B
    if B_padded != Bg:
        x2d = jnp.pad(x2d, ((0, B_padded - Bg), (0, 0)))

    partials = pl.pallas_call(
        _laplace_tiled_kernel,
        out_shape=jax.ShapeDtypeStruct((num_tiles, 8, 128), jnp.float32),
        grid=(num_tiles,),
        in_specs=[pl.BlockSpec((_TILE_B, Kg), lambda i: (i, 0)),
                  pl.BlockSpec((Kg, Kout_pad), lambda i: (0, 0))],
        out_specs=pl.BlockSpec((1, 8, 128), lambda i: (i, 0, 0)),
        compiler_params=pltpu.CompilerParams(
            dimension_semantics=("parallel",)),
    )(x2d, Lg)

    num = jnp.sum(partials[:, 0, 0])
    den = jnp.sum(partials[:, 0, 1])
    return ratio_scale * num / den


def ref_laplace_l2norm(x, avg=False, padding=None):
    """Pure-JAX reference (exact f32 adds) matching PyTorch semantics."""
    oc, ic, k1, k2 = x.shape
    pad = 1 if padding is None else padding
    xr = x.reshape(oc * ic, k1, k2).astype(jnp.float32)
    xp = jnp.pad(xr, ((0, 0), (pad, pad), (pad, pad)))
    h_out, w_out = k1 + 2 * pad - 2, k2 + 2 * pad - 2
    lap = (4.0 * xp[:, 1:1 + h_out, 1:1 + w_out]
           - xp[:, 0:h_out, 1:1 + w_out]
           - xp[:, 2:2 + h_out, 1:1 + w_out]
           - xp[:, 1:1 + h_out, 0:w_out]
           - xp[:, 1:1 + h_out, 2:2 + w_out])
    agg = jnp.mean if avg else jnp.sum
    return agg(lap ** 2) / agg(xr ** 2)


if __name__ == "__main__":
    key_a, key_b = jax.random.split(jax.random.PRNGKey(0))

    # Small conv-filter bank (out_channels, in_channels, k1, k2) -> gridless path.
    x_small = jax.random.normal(key_a, (16, 4, 7, 7), dtype=jnp.float32)
    out = jax.block_until_ready(laplace_l2norm(x_small))
    assert out.shape == ()
    ref = ref_laplace_l2norm(x_small)
    np.testing.assert_allclose(np.asarray(out), np.asarray(ref),
                               rtol=2e-3, atol=1e-6)

    out_avg = jax.block_until_ready(laplace_l2norm(x_small, avg=True))
    ref_avg = ref_laplace_l2norm(x_small, avg=True)
    np.testing.assert_allclose(np.asarray(out_avg), np.asarray(ref_avg),
                               rtol=2e-3, atol=1e-6)

    # Realistic 3x3 bank -> group-folded, tiled (parallel grid) path.
    x_large = jax.random.normal(key_b, (256, 256, 3, 3), dtype=jnp.float32)
    out_l = jax.block_until_ready(laplace_l2norm(x_large))
    ref_l = ref_laplace_l2norm(x_large)
    np.testing.assert_allclose(np.asarray(out_l), np.asarray(ref_l),
                               rtol=2e-3, atol=1e-6)

    print("KERNEL_OK")
</pallas_src>

<mosaic_0001>
module attributes {stable_mosaic.version = 11 : i64} {
  func.func @_laplace_small_kernel(%arg0: memref<16x196xf32, #tpu.memory_space<vmem>>, %arg1: memref<196x256xf32, #tpu.memory_space<vmem>>, %arg2: memref<1x1xf32, #tpu.memory_space<smem>>) attributes {dimension_semantics = [], scalar_prefetch = 0 : i64, scratch_operands = 0 : i64, tpu.core_type = #tpu.core_type<tc>} {
    %c0 = arith.constant 0 : index
    %c0_0 = arith.constant 0 : index
    %0 = vector.load %arg0[%c0, %c0_0] : memref<16x196xf32, #tpu.memory_space<vmem>>, vector<16x196xf32>
    %c0_1 = arith.constant 0 : index
    %c0_2 = arith.constant 0 : index
    %1 = vector.load %arg1[%c0_1, %c0_2] : memref<196x256xf32, #tpu.memory_space<vmem>>, vector<196x256xf32>
    %cst = arith.constant dense<0.000000e+00> : vector<16x256xf32>
    %2 = tpu.matmul %0, %1, %cst {dimension_numbers = #tpu.dot_dimension_numbers<[1], [0], [0], [1], [0, 0, 1, 1], [], []>, precision = #tpu.contract_precision<fp32>} : vector<16x196xf32>, vector<196x256xf32>, vector<16x256xf32> -> vector<16x256xf32>
    %3 = arith.mulf %2, %2 : vector<16x256xf32>
    %4 = vector.shape_cast %3 : vector<16x256xf32> to vector<1x16x256xf32>
    %cst_3 = arith.constant dense<0.000000e+00> : vector<1xf32>
    %5 = vector.multi_reduction <add>, %4, %cst_3 [1, 2] : vector<1x16x256xf32> to vector<1xf32>
    %6 = vector.shape_cast %5 : vector<1xf32> to vector<1x1x1xf32>
    %7 = vector.extract %6[0, 0, 0] : f32 from vector<1x1x1xf32>
    %8 = arith.mulf %0, %0 : vector<16x196xf32>
    %9 = vector.shape_cast %8 : vector<16x196xf32> to vector<1x16x196xf32>
    %cst_4 = arith.constant dense<0.000000e+00> : vector<1xf32>
    %10 = vector.multi_reduction <add>, %9, %cst_4 [1, 2] : vector<1x16x196xf32> to vector<1xf32>
    %11 = vector.shape_cast %10 : vector<1xf32> to vector<1x1x1xf32>
    %12 = vector.extract %11[0, 0, 0] : f32 from vector<1x1x1xf32>
    %cst_5 = arith.constant 1.000000e+00 : f32
    %13 = arith.mulf %cst_5, %7 : f32
    %14 = arith.divf %13, %12 : f32
    %c0_6 = arith.constant 0 : index
    %c0_7 = arith.constant 0 : index
    %15 = memref.load %arg2[%c0_6, %c0_7] : memref<1x1xf32, #tpu.memory_space<smem>>
    memref.store %14, %arg2[%c0_6, %c0_7] : memref<1x1xf32, #tpu.memory_space<smem>>
    return
  }
}

</mosaic_0001>

<llo_original>
// kernel: laplace_l2norm.1
$region0: #{laplace_l2norm.1}
  #allocation0 [shape = 'u32[]', space=smem, size = 0x4, offset = 0x4, fixed_abs, tag = 'smem constant byte address 0x4 - core index']
  #allocation1 [shape = 'u32[144,128]{1,0:T(1,128)}', space=vmem, size = 0x12000, scoped, tag = 'internal scratch']
  %s0 = inlined_call_operand.vmem [shape: f32[16,196], index: 0, kind: input, shape index: {}]
  %s1 = inlined_call_operand.vmem [shape: f32[196,256], index: 1, kind: input, shape index: {}]
  %s2 = inlined_call_operand.hbm [shape: f32[1,1], index: 2, kind: output, shape index: {}]
  %s3 = sld [smem:[#allocation0]]
  $region18: #{laplace_l2norm.1} parent=0
    _
  %s5 = ssub.s32 1, %s3
  %s6 = scalar_select 0, %s5, %s3
  $region1: #{laplace_l2norm.1} parent=0
    #allocation2 [shape = 'u8[512]{0}', space=smem, size = 0x200, scoped, tag = 'output window, operand 0, single buffered']
    #allocation3 [shape = 's32[1]{0}', space=sflag, size = 0x4, scoped, tag = 'scoped memory for laplace_l2norm.1']
    %7 = vsyncpa [#allocation3], 0
    // Predicated region
    $region2: #{laplace_l2norm.1} parent=1 // pred_check
      _
    $region3: #{laplace_l2norm.1} parent=1 // pred_check_branch
      %9 = sbr.rel (0) target = $region5
    $region4: #{laplace_l2norm.1} parent=1 // pred_region
      _
    $region5: #{laplace_l2norm.1} parent=1 // pred_fallthru
      _
    // Predicated region
    $region6: #{laplace_l2norm.1} parent=1 // pred_check
      _
    $region7: #{laplace_l2norm.1} parent=1 // pred_check_branch
      %11 = sbr.rel (0) target = $region9
    $region8: #{laplace_l2norm.1} parent=1 // pred_region
      _
    $region9: #{laplace_l2norm.1} parent=1 // pred_fallthru
      _
    %v12 = vld [vmem:[%s0] sm:$0xff]
    %v13 = vld [vmem:[%s0 + $0x8] sm:$0xff]
    %v14 = vld [vmem:[%s0 + $0x10] sm:$0xff]
    %v15 = vld [vmem:[%s0 + $0x18] sm:$0xff]
    %v16 = vld [vmem:[%s1] sm:$0xff]
    %v17 = vld [vmem:[%s1 + $0x8] sm:$0xff]
    %v18 = vld [vmem:[%s1 + $0x10] sm:$0xff]
    %v19 = vld [vmem:[%s1 + $0x18] sm:$0xff]
    %v20 = vld [vmem:[%s1 + $0x20] sm:$0xff]
    %v21 = vld [vmem:[%s1 + $0x28] sm:$0xff]
    %v22 = vld [vmem:[%s1 + $0x30] sm:$0xff]
    %v23 = vld [vmem:[%s1 + $0x38] sm:$0xff]
    %v24 = vld [vmem:[%s1 + $0x40] sm:$0xff]
    %v25 = vld [vmem:[%s1 + $0x48] sm:$0xff]
    %v26 = vld [vmem:[%s1 + $0x50] sm:$0xff]
    %v27 = vld [vmem:[%s1 + $0x58] sm:$0xff]
    %v28 = vld [vmem:[%s1 + $0x60] sm:$0xff]
    %v29 = vld [vmem:[%s1 + $0x68] sm:$0xff]
    %v30 = vld [vmem:[%s1 + $0x70] sm:$0xff]
    %v31 = vld [vmem:[%s1 + $0x78] sm:$0xff]
    %v32 = vld [vmem:[%s1 + $0x80] sm:$0xff]
    %v33 = vld [vmem:[%s1 + $0x88] sm:$0xff]
    %v34 = vld [vmem:[%s1 + $0x90] sm:$0xff]
    %v35 = vld [vmem:[%s1 + $0x98] sm:$0xff]
    %v36 = vld [vmem:[%s1 + $0xa0] sm:$0xff]
    %v37 = vld [vmem:[%s1 + $0xa8] sm:$0xff]
    %v38 = vld [vmem:[%s1 + $0xb0] sm:$0xff]
    %v39 = vld [vmem:[%s1 + $0xb8] sm:$0xff]
    %v40 = vld [vmem:[%s1 + $0xc0] sm:$0xff]
    %v41 = vld [vmem:[%s1 + $0xc8] sm:$0xff]
    %v42 = vld [vmem:[%s1 + $0xd0] sm:$0xff]
    %v43 = vld [vmem:[%s1 + $0xd8] sm:$0xff]
    %v44 = vld [vmem:[%s1 + $0xe0] sm:$0xff]
    %v45 = vld [vmem:[%s1 + $0xe8] sm:$0xff]
    %v46 = vld [vmem:[%s1 + $0xf0] sm:$0xff]
    %v47 = vld [vmem:[%s1 + $0xf8] sm:$0xff]
    %v48 = vld [vmem:[%s1 + $0x100] sm:$0xff]
    %v49 = vld [vmem:[%s1 + $0x108] sm:$0xff]
    %v50 = vld [vmem:[%s1 + $0x110] sm:$0xff]
    %v51 = vld [vmem:[%s1 + $0x118] sm:$0xff]
    %v52 = vld [vmem:[%s1 + $0x120] sm:$0xff]
    %v53 = vld [vmem:[%s1 + $0x128] sm:$0xff]
    %v54 = vld [vmem:[%s1 + $0x130] sm:$0xff]
    %v55 = vld [vmem:[%s1 + $0x138] sm:$0xff]
    %v56 = vld [vmem:[%s1 + $0x140] sm:$0xff]
    %v57 = vld [vmem:[%s1 + $0x148] sm:$0xff]
    %v58 = vld [vmem:[%s1 + $0x150] sm:$0xff]
    %v59 = vld [vmem:[%s1 + $0x158] sm:$0xff]
    %v60 = vld [vmem:[%s1 + $0x160] sm:$0xff]
    %v61 = vld [vmem:[%s1 + $0x168] sm:$0xff]
    %v62 = vld [vmem:[%s1 + $0x170] sm:$0xff]
    %v63 = vld [vmem:[%s1 + $0x178] sm:$0xff]
    %v64 = vld [vmem:[%s1 + $0x180] sm:$0xf]
    %v65 = vld [vmem:[%s1 + $0x188] sm:$0xf]
    %vm66 = vcmask 556032
    %v68 = vsel %vm66, %v13, 0
    %v71 = vsel %vm66, %v15, 0
    %vm73 = vcmask 1043456
    %v75 = vsel %vm73, %v64, 0
    %v78 = vsel %vm73, %v65, 0
    %v80 = vand.u32 %v17, 4294901760
    %81 = vmatprep.subr.mxu0 %v80
    %v82 = vand.u32 %v16, 4294901760
    %83 = vmatpush1.msra.mxu0 %v82
    %v84 = vand.u32 %v19, 4294901760
    %85 = vmatprep.subr.mxu0 %v84
    %v86 = vand.u32 %v18, 4294901760
    %87 = vmatpush1.msra.mxu0 %v86
    %v88 = vand.u32 %v21, 4294901760
    %89 = vmatprep.subr.mxu0 %v88
    %v90 = vand.u32 %v20, 4294901760
    %91 = vmatpush1.msra.mxu0 %v90
    %v92 = vand.u32 %v23, 4294901760
    %93 = vmatprep.subr.mxu0 %v92
    %v94 = vand.u32 %v22, 4294901760
    %95 = vmatpush1.msra.mxu0 %v94
    %v96 = vand.u32 %v25, 4294901760
    %97 = vmatprep.subr.mxu0 %v96
    %v98 = vand.u32 %v24, 4294901760
    %99 = vmatpush1.msra.mxu0 %v98
    %v100 = vand.u32 %v27, 4294901760
    %101 = vmatprep.subr.mxu0 %v100
    %v102 = vand.u32 %v26, 4294901760
    %103 = vmatpush1.msra.mxu0 %v102
    %v104 = vand.u32 %v29, 4294901760
    %105 = vmatprep.subr.mxu0 %v104
    %v106 = vand.u32 %v28, 4294901760
    %107 = vmatpush1.msra.mxu0 %v106
    %v108 = vand.u32 %v31, 4294901760
    %109 = vmatprep.subr.mxu0 %v108
    %v110 = vand.u32 %v30, 4294901760
    %111 = vmatpush1.msra.mxu0 %v110
    %v112 = vand.u32 %v33, 4294901760
    %113 = vmatprep.subr.mxu0 %v112
    %v114 = vand.u32 %v32, 4294901760
    %115 = vmatpush1.msra.mxu0 %v114
    %v116 = vand.u32 %v35, 4294901760
    %117 = vmatprep.subr.mxu0 %v116
    %v118 = vand.u32 %v34, 4294901760
    %119 = vmatpush1.msra.mxu0 %v118
    %v120 = vand.u32 %v37, 4294901760
    %121 = vmatprep.subr.mxu0 %v120
    %v122 = vand.u32 %v36, 4294901760
    %123 = vmatpush1.msra.mxu0 %v122
    %v124 = vand.u32 %v39, 4294901760
    %125 = vmatprep.subr.mxu0 %v124
    %v126 = vand.u32 %v38, 4294901760
    %127 = vmatpush1.msra.mxu0 %v126
    %v128 = vand.u32 %v41, 4294901760
    %129 = vmatprep.subr.mxu0 %v128
    %v130 = vand.u32 %v40, 4294901760
    %131 = vmatpush1.msra.mxu0 %v130
    %v132 = vand.u32 %v43, 4294901760
    %133 = vmatprep.subr.mxu0 %v132
    %v134 = vand.u32 %v42, 4294901760
    %135 = vmatpush1.msra.mxu0 %v134
    %v136 = vand.u32 %v45, 4294901760
    %137 = vmatprep.subr.mxu0 %v136
    %v138 = vand.u32 %v44, 4294901760
    %139 = vmatpush1.msra.mxu0 %v138
    %v140 = vand.u32 %v47, 4294901760
    %141 = vmatprep.subr.mxu0 %v140
    %v142 = vand.u32 %v46, 4294901760
    %143 = vmatpush1.msra.mxu0 %v142
    %v144 = vand.u32 %v49, 4294901760
    %145 = vmatprep.subr.mxu0 %v144
    %v146 = vand.u32 %v48, 4294901760
    %147 = vmatpush1.msra.mxu0 %v146
    %v148 = vand.u32 %v51, 4294901760
    %149 = vmatprep.subr.mxu0 %v148
    %v150 = vand.u32 %v50, 4294901760
    %151 = vmatpush1.msra.mxu0 %v150
    %v152 = vand.u32 %v53, 4294901760
    %153 = vmatprep.subr.mxu0 %v152
    %v154 = vand.u32 %v52, 4294901760
    %155 = vmatpush1.msra.mxu0 %v154
    %v156 = vand.u32 %v55, 4294901760
    %157 = vmatprep.subr.mxu0 %v156
    %v158 = vand.u32 %v54, 4294901760
    %159 = vmatpush1.msra.mxu0 %v158
    %v160 = vand.u32 %v57, 4294901760
    %161 = vmatprep.subr.mxu0 %v160
    %v162 = vand.u32 %v56, 4294901760
    %163 = vmatpush1.msra.mxu0 %v162
    %v164 = vand.u32 %v59, 4294901760
    %165 = vmatprep.subr.mxu0 %v164
    %v166 = vand.u32 %v58, 4294901760
    %167 = vmatpush1.msra.mxu0 %v166
    %v168 = vand.u32 %v61, 4294901760
    %169 = vmatprep.subr.mxu0 %v168
    %v170 = vand.u32 %v60, 4294901760
    %171 = vmatpush1.msra.mxu0 %v170
    %v172 = vand.u32 %v63, 4294901760
    %173 = vmatprep.subr.mxu0 %v172
    %v174 = vand.u32 %v62, 4294901760
    %175 = vmatpush1.msra.mxu0 %v174
    %v176 = vand.u32 %v78, 4294901760
    %177 = vmatprep.subr.mxu0 %v176
    %v178 = vand.u32 %v75, 4294901760
    %179 = vmatpush1.msra.mxu0 %v178
    %180 = vmatprep.subr.mxu0 0.0
    %181 = vmatpush1.msra.mxu0 0.0
    %182 = vmatprep.subr.mxu0 0.0
    %183 = vmatpush1.msra.mxu0 0.0
    %184 = vmatprep.subr.mxu0 0.0
    %185 = vmatpush1.msra.mxu0 0.0
    %186 = vmatprep.subr.mxu0 0.0
    %187 = vmatpush1.msra.mxu0 0.0
    %188 = vmatprep.subr.mxu0 0.0
    %189 = vmatpush1.msra.mxu0 0.0
    %190 = vmatprep.subr.mxu0 0.0
    %191 = vmatpush1.msra.mxu0 0.0
    %192 = vmatprep.subr.mxu0 0.0
    %193 = vmatpush1.msra.mxu0 0.0
    %v194 = vand.u32 %v68, 4294901760
    %v195 = vsub.f32 %v68, %v194
    %v196 = vand.u32 %v195, 4294901760
    %v197 = vsub.f32 %v195, %v196
    %v198 = vand.u32 %v197, 4294901760
    %199 = vmatprep.mubr.f32.mxu0 %v198
    %v200 = vand.u32 %v12, 4294901760
    %v201 = vsub.f32 %v12, %v200
    %v202 = vand.u32 %v201, 4294901760
    %v203 = vsub.f32 %v201, %v202
    %v204 = vand.u32 %v203, 4294901760
    %205 = vmatmul.mubr.f32.gmra.mrb[0].mxu0 %v204
    %v206 = vpop.f32.mrb[0].mxu0
    %v207 = vadd.f32 0.0, %v206
    %v208 = vpop.f32.mrb[0].mxu0
    %v209 = vadd.f32 0.0, %v208
    %v210 = vand.u32 %v71, 4294901760
    %v211 = vsub.f32 %v71, %v210
    %v212 = vand.u32 %v211, 4294901760
    %v213 = vsub.f32 %v211, %v212
    %v214 = vand.u32 %v213, 4294901760
    %215 = vmatprep.mubr.f32.mxu0 %v214
    %v216 = vand.u32 %v14, 4294901760
    %v217 = vsub.f32 %v14, %v216
    %v218 = vand.u32 %v217, 4294901760
    %v219 = vsub.f32 %v217, %v218
    %v220 = vand.u32 %v219, 4294901760
    %221 = vmatmul.mubr.f32.gmra.mrb[0].mxu0 %v220
    %v222 = vpop.f32.mrb[0].mxu0
    %v223 = vadd.f32 0.0, %v222
    %v224 = vpop.f32.mrb[0].mxu0
    %v225 = vadd.f32 0.0, %v224
    %226 = vdwg.mxu0
    %v227 = vand.u32 %v17, 4294901760
    %v228 = vsub.f32 %v17, %v227
    %v229 = vand.u32 %v228, 4294901760
    %v230 = vsub.f32 %v228, %v229
    %v231 = vand.u32 %v230, 4294901760
    %232 = vmatprep.subr.mxu0 %v231
    %v233 = vand.u32 %v16, 4294901760
    %v234 = vsub.f32 %v16, %v233
    %v235 = vand.u32 %v234, 4294901760
    %v236 = vsub.f32 %v234, %v235
    %v237 = vand.u32 %v236, 4294901760
    %238 = vmatpush1.msra.mxu0 %v237
    %v239 = vand.u32 %v19, 4294901760
    %v240 = vsub.f32 %v19, %v239
    %v241 = vand.u32 %v240, 4294901760
    %v242 = vsub.f32 %v240, %v241
    %v243 = vand.u32 %v242, 4294901760
    %244 = vmatprep.subr.mxu0 %v243
    %v245 = vand.u32 %v18, 4294901760
    %v246 = vsub.f32 %v18, %v245
    %v247 = vand.u32 %v246, 4294901760
    %v248 = vsub.f32 %v246, %v247
    %v249 = vand.u32 %v248, 4294901760
    %250 = vmatpush1.msra.mxu0 %v249
    %v251 = vand.u32 %v21, 4294901760
    %v252 = vsub.f32 %v21, %v251
    %v253 = vand.u32 %v252, 4294901760
    %v254 = vsub.f32 %v252, %v253
    %v255 = vand.u32 %v254, 4294901760
    %256 = vmatprep.subr.mxu0 %v255
    %v257 = vand.u32 %v20, 4294901760
    %v258 = vsub.f32 %v20, %v257
    %v259 = vand.u32 %v258, 4294901760
    %v260 = vsub.f32 %v258, %v259
    %v261 = vand.u32 %v260, 4294901760
    %262 = vmatpush1.msra.mxu0 %v261
    %v263 = vand.u32 %v23, 4294901760
    %v264 = vsub.f32 %v23, %v263
    %v265 = vand.u32 %v264, 4294901760
    %v266 = vsub.f32 %v264, %v265
    %v267 = vand.u32 %v266, 4294901760
    %268 = vmatprep.subr.mxu0 %v267
    %v269 = vand.u32 %v22, 4294901760
    %v270 = vsub.f32 %v22, %v269
    %v271 = vand.u32 %v270, 4294901760
    %v272 = vsub.f32 %v270, %v271
    %v273 = vand.u32 %v272, 4294901760
    %274 = vmatpush1.msra.mxu0 %v273
    %v275 = vand.u32 %v25, 4294901760
    %v276 = vsub.f32 %v25, %v275
    %v277 = vand.u32 %v276, 4294901760
    %v278 = vsub.f32 %v276, %v277
    %v279 = vand.u32 %v278, 4294901760
    %280 = vmatprep.subr.mxu0 %v279
    %v281 = vand.u32 %v24, 4294901760
    %v282 = vsub.f32 %v24, %v281
    %v283 = vand.u32 %v282, 4294901760
    %v284 = vsub.f32 %v282, %v283
    %v285 = vand.u32 %v284, 4294901760
    %286 = vmatpush1.msra.mxu0 %v285
    %v287 = vand.u32 %v27, 4294901760
    %v288 = vsub.f32 %v27, %v287
    %v289 = vand.u32 %v288, 4294901760
    %v290 = vsub.f32 %v288, %v289
    %v291 = vand.u32 %v290, 4294901760
    %292 = vmatprep.subr.mxu0 %v291
    %v293 = vand.u32 %v26, 4294901760
    %v294 = vsub.f32 %v26, %v293
    %v295 = vand.u32 %v294, 4294901760
    %v296 = vsub.f32 %v294, %v295
    %v297 = vand.u32 %v296, 4294901760
    %298 = vmatpush1.msra.mxu0 %v297
    %v299 = vand.u32 %v29, 4294901760
    %v300 = vsub.f32 %v29, %v299
    %v301 = vand.u32 %v300, 4294901760
    %v302 = vsub.f32 %v300, %v301
    %v303 = vand.u32 %v302, 4294901760
    %304 = vmatprep.subr.mxu0 %v303
    %v305 = vand.u32 %v28, 4294901760
    %v306 = vsub.f32 %v28, %v305
    %v307 = vand.u32 %v306, 4294901760
    %v308 = vsub.f32 %v306, %v307
    %v309 = vand.u32 %v308, 4294901760
    %310 = vmatpush1.msra.mxu0 %v309
    %v311 = vand.u32 %v31, 4294901760
    %v312 = vsub.f32 %v31, %v311
    %v313 = vand.u32 %v312, 4294901760
    %v314 = vsub.f32 %v312, %v313
    %v315 = vand.u32 %v314, 4294901760
    %316 = vmatprep.subr.mxu0 %v315
    %v317 = vand.u32 %v30, 4294901760
    %v318 = vsub.f32 %v30, %v317
    %v319 = vand.u32 %v318, 4294901760
    %v320 = vsub.f32 %v318, %v319
    %v321 = vand.u32 %v320, 4294901760
    %322 = vmatpush1.msra.mxu0 %v321
    %v323 = vand.u32 %v33, 4294901760
    %v324 = vsub.f32 %v33, %v323
    %v325 = vand.u32 %v324, 4294901760
    %v326 = vsub.f32 %v324, %v325
    %v327 = vand.u32 %v326, 4294901760
    %328 = vmatprep.subr.mxu0 %v327
    %v329 = vand.u32 %v32, 4294901760
    %v330 = vsub.f32 %v32, %v329
    %v331 = vand.u32 %v330, 4294901760
    %v332 = vsub.f32 %v330, %v331
    %v333 = vand.u32 %v332, 4294901760
    %334 = vmatpush1.msra.mxu0 %v333
    %v335 = vand.u32 %v35, 4294901760
    %v336 = vsub.f32 %v35, %v335
    %v337 = vand.u32 %v336, 4294901760
    %v338 = vsub.f32 %v336, %v337
    %v339 = vand.u32 %v338, 4294901760
    %340 = vmatprep.subr.mxu0 %v339
    %v341 = vand.u32 %v34, 4294901760
    %v342 = vsub.f32 %v34, %v341
    %v343 = vand.u32 %v342, 4294901760
    %v344 = vsub.f32 %v342, %v343
    %v345 = vand.u32 %v344, 4294901760
    %346 = vmatpush1.msra.mxu0 %v345
    %v347 = vand.u32 %v37, 4294901760
    %v348 = vsub.f32 %v37, %v347
    %v349 = vand.u32 %v348, 4294901760
    %v350 = vsub.f32 %v348, %v349
    %v351 = vand.u32 %v350, 4294901760
    %352 = vmatprep.subr.mxu0 %v351
    %v353 = vand.u32 %v36, 4294901760
    %v354 = vsub.f32 %v36, %v353
    %v355 = vand.u32 %v354, 4294901760
    %v356 = vsub.f32 %v354, %v355
    %v357 = vand.u32 %v356, 4294901760
    %358 = vmatpush1.msra.mxu0 %v357
    %v359 = vand.u32 %v39, 4294901760
    %v360 = vsub.f32 %v39, %v359
    %v361 = vand.u32 %v360, 4294901760
    %v362 = vsub.f32 %v360, %v361
    %v363 = vand.u32 %v362, 4294901760
    %364 = vmatprep.subr.mxu0 %v363
    %v365 = vand.u32 %v38, 4294901760
    %v366 = vsub.f32 %v38, %v365
    %v367 = vand.u32 %v366, 4294901760
    %v368 = vsub.f32 %v366, %v367
    %v369 = vand.u32 %v368, 4294901760
    %370 = vmatpush1.msra.mxu0 %v369
    %v371 = vand.u32 %v41, 4294901760
    %v372 = vsub.f32 %v41, %v371
    %v373 = vand.u32 %v372, 4294901760
    %v374 = vsub.f32 %v372, %v373
    %v375 = vand.u32 %v374, 4294901760
    %376 = vmatprep.subr.mxu0 %v375
    %v377 = vand.u32 %v40, 4294901760
    %v378 = vsub.f32 %v40, %v377
    %v379 = vand.u32 %v378, 4294901760
    %v380 = vsub.f32 %v378, %v379
    %v381 = vand.u32 %v380, 4294901760
    %382 = vmatpush1.msra.mxu0 %v381
    %v383 = vand.u32 %v43, 4294901760
    %v384 = vsub.f32 %v43, %v383
    %v385 = vand.u32 %v384, 4294901760
    %v386 = vsub.f32 %v384, %v385
    %v387 = vand.u32 %v386, 4294901760
    %388 = vmatprep.subr.mxu0 %v387
    %v389 = vand.u32 %v42, 4294901760
    %v390 = vsub.f32 %v42, %v389
    %v391 = vand.u32 %v390, 4294901760
    %v392 = vsub.f32 %v390, %v391
    %v393 = vand.u32 %v392, 4294901760
    %394 = vmatpush1.msra.mxu0 %v393
    %v395 = vand.u32 %v45, 4294901760
    %v396 = vsub.f32 %v45, %v395
    %v397 = vand.u32 %v396, 4294901760
    %v398 = vsub.f32 %v396, %v397
    %v399 = vand.u32 %v398, 4294901760
    %400 = vmatprep.subr.mxu0 %v399
    %v401 = vand.u32 %v44, 4294901760
    %v402 = vsub.f32 %v44, %v401
    %v403 = vand.u32 %v402, 4294901760
    %v404 = vsub.f32 %v402, %v403
    %v405 = vand.u32 %v404, 4294901760
    %406 = vmatpush1.msra.mxu0 %v405
    %v407 = vand.u32 %v47, 4294901760
    %v408 = vsub.f32 %v47, %v407
    %v409 = vand.u32 %v408, 4294901760
    %v410 = vsub.f32 %v408, %v409
    %v411 = vand.u32 %v410, 4294901760
    %412 = vmatprep.subr.mxu0 %v411
    %v413 = vand.u32 %v46, 4294901760
    %v414 = vsub.f32 %v46, %v413
    %v415 = vand.u32 %v414, 4294901760
    %v416 = vsub.f32 %v414, %v415
    %v417 = vand.u32 %v416, 4294901760
    %418 = vmatpush1.msra.mxu0 %v417
    %v419 = vand.u32 %v49, 4294901760
    %v420 = vsub.f32 %v49, %v419
    %v421 = vand.u32 %v420, 4294901760
    %v422 = vsub.f32 %v420, %v421
    %v423 = vand.u32 %v422, 4294901760
    %424 = vmatprep.subr.mxu0 %v423
    %v425 = vand.u32 %v48, 4294901760
    %v426 = vsub.f32 %v48, %v425
    %v427 = vand.u32 %v426, 4294901760
    %v428 = vsub.f32 %v426, %v427
    %v429 = vand.u32 %v428, 4294901760
    %430 = vmatpush1.msra.mxu0 %v429
    %v431 = vand.u32 %v51, 4294901760
    %v432 = vsub.f32 %v51, %v431
    %v433 = vand.u32 %v432, 4294901760
    %v434 = vsub.f32 %v432, %v433
    %v435 = vand.u32 %v434, 4294901760
    %436 = vmatprep.subr.mxu0 %v435
    %v437 = vand.u32 %v50, 4294901760
    %v438 = vsub.f32 %v50, %v437
    %v439 = vand.u32 %v438, 4294901760
    %v440 = vsub.f32 %v438, %v439
    %v441 = vand.u32 %v440, 4294901760
    %442 = vmatpush1.msra.mxu0 %v441
    %v443 = vand.u32 %v53, 4294901760
    %v444 = vsub.f32 %v53, %v443
    %v445 = vand.u32 %v444, 4294901760
    %v446 = vsub.f32 %v444, %v445
    %v447 = vand.u32 %v446, 4294901760
    %448 = vmatprep.subr.mxu0 %v447
    %v449 = vand.u32 %v52, 4294901760
    %v450 = vsub.f32 %v52, %v449
    %v451 = vand.u32 %v450, 4294901760
    %v452 = vsub.f32 %v450, %v451
    %v453 = vand.u32 %v452, 4294901760
    %454 = vmatpush1.msra.mxu0 %v453
    %v455 = vand.u32 %v55, 4294901760
    %v456 = vsub.f32 %v55, %v455
    %v457 = vand.u32 %v456, 4294901760
    %v458 = vsub.f32 %v456, %v457
    %v459 = vand.u32 %v458, 4294901760
    %460 = vmatprep.subr.mxu0 %v459
    %v461 = vand.u32 %v54, 4294901760
    %v462 = vsub.f32 %v54, %v461
    %v463 = vand.u32 %v462, 4294901760
    %v464 = vsub.f32 %v462, %v463
    %v465 = vand.u32 %v464, 4294901760
    %466 = vmatpush1.msra.mxu0 %v465
    %v467 = vand.u32 %v57, 4294901760
    %v468 = vsub.f32 %v57, %v467
    %v469 = vand.u32 %v468, 4294901760
    %v470 = vsub.f32 %v468, %v469
    %v471 = vand.u32 %v470, 4294901760
    %472 = vmatprep.subr.mxu0 %v471
    %v473 = vand.u32 %v56, 4294901760
    %v474 = vsub.f32 %v56, %v473
    %v475 = vand.u32 %v474, 4294901760
    %v476 = vsub.f32 %v474, %v475
    %v477 = vand.u32 %v476, 4294901760
    %478 = vmatpush1.msra.mxu0 %v477
    %v479 = vand.u32 %v59, 4294901760
    %v480 = vsub.f32 %v59, %v479
    %v481 = vand.u32 %v480, 4294901760
    %v482 = vsub.f32 %v480, %v481
    %v483 = vand.u32 %v482, 4294901760
    %484 = vmatprep.subr.mxu0 %v483
    %v485 = vand.u32 %v58, 4294901760
    %v486 = vsub.f32 %v58, %v485
    %v487 = vand.u32 %v486, 4294901760
    %v488 = vsub.f32 %v486, %v487
    %v489 = vand.u32 %v488, 4294901760
    %490 = vmatpush1.msra.mxu0 %v489
    %v491 = vand.u32 %v61, 4294901760
    %v492 = vsub.f32 %v61, %v491
    %v493 = vand.u32 %v492, 4294901760
    %v494 = vsub.f32 %v492, %v493
    %v495 = vand.u32 %v494, 4294901760
    %496 = vmatprep.subr.mxu0 %v495
    %v497 = vand.u32 %v60, 4294901760
    %v498 = vsub.f32 %v60, %v497
    %v499 = vand.u32 %v498, 4294901760
    %v500 = vsub.f32 %v498, %v499
    %v501 = vand.u32 %v500, 4294901760
    %502 = vmatpush1.msra.mxu0 %v501
    %v503 = vand.u32 %v63, 4294901760
    %v504 = vsub.f32 %v63, %v503
    %v505 = vand.u32 %v504, 4294901760
    %v506 = vsub.f32 %v504, %v505
    %v507 = vand.u32 %v506, 4294901760
    %508 = vmatprep.subr.mxu0 %v507
    %v509 = vand.u32 %v62, 4294901760
    %v510 = vsub.f32 %v62, %v509
    %v511 = vand.u32 %v510, 4294901760
    %v512 = vsub.f32 %v510, %v511
    %v513 = vand.u32 %v512, 4294901760
    %514 = vmatpush1.msra.mxu0 %v513
    %v515 = vand.u32 %v78, 4294901760
    %v516 = vsub.f32 %v78, %v515
    %v517 = vand.u32 %v516, 4294901760
    %v518 = vsub.f32 %v516, %v517
    %v519 = vand.u32 %v518, 4294901760
    %520 = vmatprep.subr.mxu0 %v519
    %v521 = vand.u32 %v75, 4294901760
    %v522 = vsub.f32 %v75, %v521
    %v523 = vand.u32 %v522, 4294901760
    %v524 = vsub.f32 %v522, %v523
    %v525 = vand.u32 %v524, 4294901760
    %526 = vmatpush1.msra.mxu0 %v525
    %527 = vmatprep.subr.mxu0 0.0
    %528 = vmatpush1.msra.mxu0 0.0
    %529 = vmatprep.subr.mxu0 0.0
    %530 = vmatpush1.msra.mxu0 0.0
    %531 = vmatprep.subr.mxu0 0.0
    %532 = vmatpush1.msra.mxu0 0.0
    %533 = vmatprep.subr.mxu0 0.0
    %534 = vmatpush1.msra.mxu0 0.0
    %535 = vmatprep.subr.mxu0 0.0
    %536 = vmatpush1.msra.mxu0 0.0
    %537 = vmatprep.subr.mxu0 0.0
    %538 = vmatpush1.msra.mxu0 0.0
    %539 = vmatprep.subr.mxu0 0.0
    %540 = vmatpush1.msra.mxu0 0.0
    %v541 = vand.u32 %v68, 4294901760
    %542 = vmatprep.mubr.f32.mxu0 %v541
    %v543 = vand.u32 %v12, 4294901760
    %544 = vmatmul.mubr.f32.gmra.mrb[0].mxu0 %v543
    %v545 = vpop.f32.mrb[0].mxu0
    %v546 = vadd.f32 %v207, %v545
    %v547 = vpop.f32.mrb[0].mxu0
    %v548 = vadd.f32 %v209, %v547
    %v549 = vand.u32 %v71, 4294901760
    %550 = vmatprep.mubr.f32.mxu0 %v549
    %v551 = vand.u32 %v14, 4294901760
    %552 = vmatmul.mubr.f32.gmra.mrb[0].mxu0 %v551
    %v553 = vpop.f32.mrb[0].mxu0
    %v554 = vadd.f32 %v223, %v553
    %v555 = vpop.f32.mrb[0].mxu0
    %v556 = vadd.f32 %v225, %v555
    %557 = vdwg.mxu0
    %v558 = vand.u32 %v17, 4294901760
    %v559 = vsub.f32 %v17, %v558
    %560 = vmatprep.subr.mxu0 %v559
    %v561 = vand.u32 %v16, 4294901760
    %v562 = vsub.f32 %v16, %v561
    %563 = vmatpush1.msra.mxu0 %v562
    %v564 = vand.u32 %v19, 4294901760
    %v565 = vsub.f32 %v19, %v564
    %566 = vmatprep.subr.mxu0 %v565
    %v567 = vand.u32 %v18, 4294901760
    %v568 = vsub.f32 %v18, %v567
    %569 = vmatpush1.msra.mxu0 %v568
    %v570 = vand.u32 %v21, 4294901760
    %v571 = vsub.f32 %v21, %v570
    %572 = vmatprep.subr.mxu0 %v571
    %v573 = vand.u32 %v20, 4294901760
    %v574 = vsub.f32 %v20, %v573
    %575 = vmatpush1.msra.mxu0 %v574
    %v576 = vand.u32 %v23, 4294901760
    %v577 = vsub.f32 %v23, %v576
    %578 = vmatprep.subr.mxu0 %v577
    %v579 = vand.u32 %v22, 4294901760
    %v580 = vsub.f32 %v22, %v579
    %581 = vmatpush1.msra.mxu0 %v580
    %v582 = vand.u32 %v25, 4294901760
    %v583 = vsub.f32 %v25, %v582
    %584 = vmatprep.subr.mxu0 %v583
    %v585 = vand.u32 %v24, 4294901760
    %v586 = vsub.f32 %v24, %v585
    %587 = vmatpush1.msra.mxu0 %v586
    %v588 = vand.u32 %v27, 4294901760
    %v589 = vsub.f32 %v27, %v588
    %590 = vmatprep.subr.mxu0 %v589
    %v591 = vand.u32 %v26, 4294901760
    %v592 = vsub.f32 %v26, %v591
    %593 = vmatpush1.msra.mxu0 %v592
    %v594 = vand.u32 %v29, 4294901760
    %v595 = vsub.f32 %v29, %v594
    %596 = vmatprep.subr.mxu0 %v595
    %v597 = vand.u32 %v28, 4294901760
    %v598 = vsub.f32 %v28, %v597
    %599 = vmatpush1.msra.mxu0 %v598
    %v600 = vand.u32 %v31, 4294901760
    %v601 = vsub.f32 %v31, %v600
    %602 = vmatprep.subr.mxu0 %v601
    %v603 = vand.u32 %v30, 4294901760
    %v604 = vsub.f32 %v30, %v603
    %605 = vmatpush1.msra.mxu0 %v604
    %v606 = vand.u32 %v33, 4294901760
    %v607 = vsub.f32 %v33, %v606
    %608 = vmatprep.subr.mxu0 %v607
    %v609 = vand.u32 %v32, 4294901760
    %v610 = vsub.f32 %v32, %v609
    %611 = vmatpush1.msra.mxu0 %v610
    %v612 = vand.u32 %v35, 4294901760
    %v613 = vsub.f32 %v35, %v612
    %614 = vmatprep.subr.mxu0 %v613
    %v615 = vand.u32 %v34, 4294901760
    %v616 = vsub.f32 %v34, %v615
    %617 = vmatpush1.msra.mxu0 %v616
    %v618 = vand.u32 %v37, 4294901760
    %v619 = vsub.f32 %v37, %v618
    %620 = vmatprep.subr.mxu0 %v619
    %v621 = vand.u32 %v36, 4294901760
    %v622 = vsub.f32 %v36, %v621
    %623 = vmatpush1.msra.mxu0 %v622
    %v624 = vand.u32 %v39, 4294901760
    %v625 = vsub.f32 %v39, %v624
    %626 = vmatprep.subr.mxu0 %v625
    %v627 = vand.u32 %v38, 4294901760
    %v628 = vsub.f32 %v38, %v627
    %629 = vmatpush1.msra.mxu0 %v628
    %v630 = vand.u32 %v41, 4294901760
    %v631 = vsub.f32 %v41, %v630
    %632 = vmatprep.subr.mxu0 %v631
    %v633 = vand.u32 %v40, 4294901760
    %v634 = vsub.f32 %v40, %v633
    %635 = vmatpush1.msra.mxu0 %v634
    %v636 = vand.u32 %v43, 4294901760
    %v637 = vsub.f32 %v43, %v636
    %638 = vmatprep.subr.mxu0 %v637
    %v639 = vand.u32 %v42, 4294901760
    %v640 = vsub.f32 %v42, %v639
    %641 = vmatpush1.msra.mxu0 %v640
    %v642 = vand.u32 %v45, 4294901760
    %v643 = vsub.f32 %v45, %v642
    %644 = vmatprep.subr.mxu0 %v643
    %v645 = vand.u32 %v44, 4294901760
    %v646 = vsub.f32 %v44, %v645
    %647 = vmatpush1.msra.mxu0 %v646
    %v648 = vand.u32 %v47, 4294901760
    %v649 = vsub.f32 %v47, %v648
    %650 = vmatprep.subr.mxu0 %v649
    %v651 = vand.u32 %v46, 4294901760
    %v652 = vsub.f32 %v46, %v651
    %653 = vmatpush1.msra.mxu0 %v652
    %v654 = vand.u32 %v49, 4294901760
    %v655 = vsub.f32 %v49, %v654
    %656 = vmatprep.subr.mxu0 %v655
    %v657 = vand.u32 %v48, 4294901760
    %v658 = vsub.f32 %v48, %v657
    %659 = vmatpush1.msra.mxu0 %v658
    %v660 = vand.u32 %v51, 4294901760
    %v661 = vsub.f32 %v51, %v660
    %662 = vmatprep.subr.mxu0 %v661
    %v663 = vand.u32 %v50, 4294901760
    %v664 = vsub.f32 %v50, %v663
    %665 = vmatpush1.msra.mxu0 %v664
    %v666 = vand.u32 %v53, 4294901760
    %v667 = vsub.f32 %v53, %v666
    %668 = vmatprep.subr.mxu0 %v667
    %v669 = vand.u32 %v52, 4294901760
    %v670 = vsub.f32 %v52, %v669
    %671 = vmatpush1.msra.mxu0 %v670
    %v672 = vand.u32 %v55, 4294901760
    %v673 = vsub.f32 %v55, %v672
    %674 = vmatprep.subr.mxu0 %v673
    %v675 = vand.u32 %v54, 4294901760
    %v676 = vsub.f32 %v54, %v675
    %677 = vmatpush1.msra.mxu0 %v676
    %v678 = vand.u32 %v57, 4294901760
    %v679 = vsub.f32 %v57, %v678
    %680 = vmatprep.subr.mxu0 %v679
    %v681 = vand.u32 %v56, 4294901760
    %v682 = vsub.f32 %v56, %v681
    %683 = vmatpush1.msra.mxu0 %v682
    %v684 = vand.u32 %v59, 4294901760
    %v685 = vsub.f32 %v59, %v684
    %686 = vmatprep.subr.mxu0 %v685
    %v687 = vand.u32 %v58, 4294901760
    %v688 = vsub.f32 %v58, %v687
    %689 = vmatpush1.msra.mxu0 %v688
    %v690 = vand.u32 %v61, 4294901760
    %v691 = vsub.f32 %v61, %v690
    %692 = vmatprep.subr.mxu0 %v691
    %v693 = vand.u32 %v60, 4294901760
    %v694 = vsub.f32 %v60, %v693
    %695 = vmatpush1.msra.mxu0 %v694
    %v696 = vand.u32 %v63, 4294901760
    %v697 = vsub.f32 %v63, %v696
    %698 = vmatprep.subr.mxu0 %v697
    %v699 = vand.u32 %v62, 4294901760
    %v700 = vsub.f32 %v62, %v699
    %701 = vmatpush1.msra.mxu0 %v700
    %v702 = vand.u32 %v78, 4294901760
    %v703 = vsub.f32 %v78, %v702
    %704 = vmatprep.subr.mxu0 %v703
    %v705 = vand.u32 %v75, 4294901760
    %v706 = vsub.f32 %v75, %v705
    %707 = vmatpush1.msra.mxu0 %v706
    %708 = vmatprep.subr.mxu0 0.0
    %709 = vmatpush1.msra.mxu0 0.0
    %710 = vmatprep.subr.mxu0 0.0
    %711 = vmatpush1.msra.mxu0 0.0
    %712 = vmatprep.subr.mxu0 0.0
    %713 = vmatpush1.msra.mxu0 0.0
    %714 = vmatprep.subr.mxu0 0.0
    %715 = vmatpush1.msra.mxu0 0.0
    %716 = vmatprep.subr.mxu0 0.0
    %717 = vmatpush1.msra.mxu0 0.0
    %718 = vmatprep.subr.mxu0 0.0
    %719 = vmatpush1.msra.mxu0 0.0
    %720 = vmatprep.subr.mxu0 0.0
    %721 = vmatpush1.msra.mxu0 0.0
    %v722 = vand.u32 %v68, 4294901760
    %v723 = vsub.f32 %v68, %v722
    %724 = vmatprep.mubr.f32.mxu0 %v723
    %v725 = vand.u32 %v12, 4294901760
    %v726 = vsub.f32 %v12, %v725
    %727 = vmatmul.mubr.f32.gmra.mrb[0].mxu0 %v726
    %v728 = vpop.f32.mrb[0].mxu0
    %v729 = vadd.f32 %v546, %v728
    %v730 = vpop.f32.mrb[0].mxu0
    %v731 = vadd.f32 %v548, %v730
    %v732 = vand.u32 %v71, 4294901760
    %v733 = vsub.f32 %v71, %v732
    %734 = vmatprep.mubr.f32.mxu0 %v733
    %v735 = vand.u32 %v14, 4294901760
    %v736 = vsub.f32 %v14, %v735
    %737 = vmatmul.mubr.f32.gmra.mrb[0].mxu0 %v736
    %v738 = vpop.f32.mrb[0].mxu0
    %v739 = vadd.f32 %v554, %v738
    %v740 = vpop.f32.mrb[0].mxu0
    %v741 = vadd.f32 %v556, %v740
    %742 = vdwg.mxu0
    %v743 = vand.u32 %v17, 4294901760
    %744 = vmatprep.subr.mxu0 %v743
    %v745 = vand.u32 %v16, 4294901760
    %746 = vmatpush1.msra.mxu0 %v745
    %v747 = vand.u32 %v19, 4294901760
    %748 = vmatprep.subr.mxu0 %v747
    %v749 = vand.u32 %v18, 4294901760
    %750 = vmatpush1.msra.mxu0 %v749
    %v751 = vand.u32 %v21, 4294901760
    %752 = vmatprep.subr.mxu0 %v751
    %v753 = vand.u32 %v20, 4294901760
    %754 = vmatpush1.msra.mxu0 %v753
    %v755 = vand.u32 %v23, 4294901760
    %756 = vmatprep.subr.mxu0 %v755
    %v757 = vand.u32 %v22, 4294901760
    %758 = vmatpush1.msra.mxu0 %v757
    %v759 = vand.u32 %v25, 4294901760
    %760 = vmatprep.subr.mxu0 %v759
    %v761 = vand.u32 %v24, 4294901760
    %762 = vmatpush1.msra.mxu0 %v761
    %v763 = vand.u32 %v27, 4294901760
    %764 = vmatprep.subr.mxu0 %v763
    %v765 = vand.u32 %v26, 4294901760
    %766 = vmatpush1.msra.mxu0 %v765
    %v767 = vand.u32 %v29, 4294901760
    %768 = vmatprep.subr.mxu0 %v767
    %v769 = vand.u32 %v28, 4294901760
    %770 = vmatpush1.msra.mxu0 %v769
    %v771 = vand.u32 %v31, 4294901760
    %772 = vmatprep.subr.mxu0 %v771
    %v773 = vand.u32 %v30, 4294901760
    %774 = vmatpush1.msra.mxu0 %v773
    %v775 = vand.u32 %v33, 4294901760
    %776 = vmatprep.subr.mxu0 %v775
    %v777 = vand.u32 %v32, 4294901760
    %778 = vmatpush1.msra.mxu0 %v777
    %v779 = vand.u32 %v35, 4294901760
    %780 = vmatprep.subr.mxu0 %v779
    %v781 = vand.u32 %v34, 4294901760
    %782 = vmatpush1.msra.mxu0 %v781
    %v783 = vand.u32 %v37, 4294901760
    %784 = vmatprep.subr.mxu0 %v783
    %v785 = vand.u32 %v36, 4294901760
    %786 = vmatpush1.msra.mxu0 %v785
    %v787 = vand.u32 %v39, 4294901760
    %788 = vmatprep.subr.mxu0 %v787
    %v789 = vand.u32 %v38, 4294901760
    %790 = vmatpush1.msra.mxu0 %v789
    %v791 = vand.u32 %v41, 4294901760
    %792 = vmatprep.subr.mxu0 %v791
    %v793 = vand.u32 %v40, 4294901760
    %794 = vmatpush1.msra.mxu0 %v793
    %v795 = vand.u32 %v43, 4294901760
    %796 = vmatprep.subr.mxu0 %v795
    %v797 = vand.u32 %v42, 4294901760
    %798 = vmatpush1.msra.mxu0 %v797
    %v799 = vand.u32 %v45, 4294901760
    %800 = vmatprep.subr.mxu0 %v799
    %v801 = vand.u32 %v44, 4294901760
    %802 = vmatpush1.msra.mxu0 %v801
    %v803 = vand.u32 %v47, 4294901760
    %804 = vmatprep.subr.mxu0 %v803
    %v805 = vand.u32 %v46, 4294901760
    %806 = vmatpush1.msra.mxu0 %v805
    %v807 = vand.u32 %v49, 4294901760
    %808 = vmatprep.subr.mxu0 %v807
    %v809 = vand.u32 %v48, 4294901760
    %810 = vmatpush1.msra.mxu0 %v809
    %v811 = vand.u32 %v51, 4294901760
    %812 = vmatprep.subr.mxu0 %v811
    %v813 = vand.u32 %v50, 4294901760
    %814 = vmatpush1.msra.mxu0 %v813
    %v815 = vand.u32 %v53, 4294901760
    %816 = vmatprep.subr.mxu0 %v815
    %v817 = vand.u32 %v52, 4294901760
    %818 = vmatpush1.msra.mxu0 %v817
    %v819 = vand.u32 %v55, 4294901760
    %820 = vmatprep.subr.mxu0 %v819
    %v821 = vand.u32 %v54, 4294901760
    %822 = vmatpush1.msra.mxu0 %v821
    %v823 = vand.u32 %v57, 4294901760
    %824 = vmatprep.subr.mxu0 %v823
    %v825 = vand.u32 %v56, 4294901760
    %826 = vmatpush1.msra.mxu0 %v825
    %v827 = vand.u32 %v59, 4294901760
    %828 = vmatprep.subr.mxu0 %v827
    %v829 = vand.u32 %v58, 4294901760
    %830 = vmatpush1.msra.mxu0 %v829
    %v831 = vand.u32 %v61, 4294901760
    %832 = vmatprep.subr.mxu0 %v831
    %v833 = vand.u32 %v60, 4294901760
    %834 = vmatpush1.msra.mxu0 %v833
    %v835 = vand.u32 %v63, 4294901760
    %836 = vmatprep.subr.mxu0 %v835
    %v837 = vand.u32 %v62, 4294901760
    %838 = vmatpush1.msra.mxu0 %v837
    %v839 = vand.u32 %v78, 4294901760
    %840 = vmatprep.subr.mxu0 %v839
    %v841 = vand.u32 %v75, 4294901760
    %842 = vmatpush1.msra.mxu0 %v841
    %843 = vmatprep.subr.mxu0 0.0
    %844 = vmatpush1.msra.mxu0 0.0
    %845 = vmatprep.subr.mxu0 0.0
    %846 = vmatpush1.msra.mxu0 0.0
    %847 = vmatprep.subr.mxu0 0.0
    %848 = vmatpush1.msra.mxu0 0.0
    %849 = vmatprep.subr.mxu0 0.0
    %850 = vmatpush1.msra.mxu0 0.0
    %851 = vmatprep.subr.mxu0 0.0
    %852 = vmatpush1.msra.mxu0 0.0
    %853 = vmatprep.subr.mxu0 0.0
    %854 = vmatpush1.msra.mxu0 0.0
    %855 = vmatprep.subr.mxu0 0.0
    %856 = vmatpush1.msra.mxu0 0.0
    %v857 = vand.u32 %v68, 4294901760
    %v858 = vsub.f32 %v68, %v857
    %v859 = vand.u32 %v858, 4294901760
    %860 = vmatprep.mubr.f32.mxu0 %v859
    %v861 = vand.u32 %v12, 4294901760
    %v862 = vsub.f32 %v12, %v861
    %v863 = vand.u32 %v862, 4294901760
    %864 = vmatmul.mubr.f32.gmra.mrb[0].mxu0 %v863
    %v865 = vpop.f32.mrb[0].mxu0
    %v866 = vadd.f32 %v729, %v865
    %v867 = vpop.f32.mrb[0].mxu0
    %v868 = vadd.f32 %v731, %v867
    %v869 = vand.u32 %v71, 4294901760
    %v870 = vsub.f32 %v71, %v869
    %v871 = vand.u32 %v870, 4294901760
    %872 = vmatprep.mubr.f32.mxu0 %v871
    %v873 = vand.u32 %v14, 4294901760
    %v874 = vsub.f32 %v14, %v873
    %v875 = vand.u32 %v874, 4294901760
    %876 = vmatmul.mubr.f32.gmra.mrb[0].mxu0 %v875
    %v877 = vpop.f32.mrb[0].mxu0
    %v878 = vadd.f32 %v739, %v877
    %v879 = vpop.f32.mrb[0].mxu0
    %v880 = vadd.f32 %v741, %v879
    %881 = vdwg.mxu0
    %v882 = vand.u32 %v17, 4294901760
    %v883 = vsub.f32 %v17, %v882
    %v884 = vand.u32 %v883, 4294901760
    %885 = vmatprep.subr.mxu0 %v884
    %v886 = vand.u32 %v16, 4294901760
    %v887 = vsub.f32 %v16, %v886
    %v888 = vand.u32 %v887, 4294901760
    %889 = vmatpush1.msra.mxu0 %v888
    %v890 = vand.u32 %v19, 4294901760
    %v891 = vsub.f32 %v19, %v890
    %v892 = vand.u32 %v891, 4294901760
    %893 = vmatprep.subr.mxu0 %v892
    %v894 = vand.u32 %v18, 4294901760
    %v895 = vsub.f32 %v18, %v894
    %v896 = vand.u32 %v895, 4294901760
    %897 = vmatpush1.msra.mxu0 %v896
    %v898 = vand.u32 %v21, 4294901760
    %v899 = vsub.f32 %v21, %v898
    %v900 = vand.u32 %v899, 4294901760
    %901 = vmatprep.subr.mxu0 %v900
    %v902 = vand.u32 %v20, 4294901760
    %v903 = vsub.f32 %v20, %v902
    %v904 = vand.u32 %v903, 4294901760
    %905 = vmatpush1.msra.mxu0 %v904
    %v906 = vand.u32 %v23, 4294901760
    %v907 = vsub.f32 %v23, %v906
    %v908 = vand.u32 %v907, 4294901760
    %909 = vmatprep.subr.mxu0 %v908
    %v910 = vand.u32 %v22, 4294901760
    %v911 = vsub.f32 %v22, %v910
    %v912 = vand.u32 %v911, 4294901760
    %913 = vmatpush1.msra.mxu0 %v912
    %v914 = vand.u32 %v25, 4294901760
    %v915 = vsub.f32 %v25, %v914
    %v916 = vand.u32 %v915, 4294901760
    %917 = vmatprep.subr.mxu0 %v916
    %v918 = vand.u32 %v24, 4294901760
    %v919 = vsub.f32 %v24, %v918
    %v920 = vand.u32 %v919, 4294901760
    %921 = vmatpush1.msra.mxu0 %v920
    %v922 = vand.u32 %v27, 4294901760
    %v923 = vsub.f32 %v27, %v922
    %v924 = vand.u32 %v923, 4294901760
    %925 = vmatprep.subr.mxu0 %v924
    %v926 = vand.u32 %v26, 4294901760
    %v927 = vsub.f32 %v26, %v926
    %v928 = vand.u32 %v927, 4294901760
    %929 = vmatpush1.msra.mxu0 %v928
    %v930 = vand.u32 %v29, 4294901760
    %v931 = vsub.f32 %v29, %v930
    %v932 = vand.u32 %v931, 4294901760
    %933 = vmatprep.subr.mxu0 %v932
    %v934 = vand.u32 %v28, 4294901760
    %v935 = vsub.f32 %v28, %v934
    %v936 = vand.u32 %v935, 4294901760
    %937 = vmatpush1.msra.mxu0 %v936
    %v938 = vand.u32 %v31, 4294901760
    %v939 = vsub.f32 %v31, %v938
    %v940 = vand.u32 %v939, 4294901760
    %941 = vmatprep.subr.mxu0 %v940
    %v942 = vand.u32 %v30, 4294901760
    %v943 = vsub.f32 %v30, %v942
    %v944 = vand.u32 %v943, 4294901760
    %945 = vmatpush1.msra.mxu0 %v944
    %v946 = vand.u32 %v33, 4294901760
    %v947 = vsub.f32 %v33, %v946
    %v948 = vand.u32 %v947, 4294901760
    %949 = vmatprep.subr.mxu0 %v948
    %v950 = vand.u32 %v32, 4294901760
    %v951 = vsub.f32 %v32, %v950
    %v952 = vand.u32 %v951, 4294901760
    %953 = vmatpush1.msra.mxu0 %v952
    %v954 = vand.u32 %v35, 4294901760
    %v955 = vsub.f32 %v35, %v954
    %v956 = vand.u32 %v955, 4294901760
    %957 = vmatprep.subr.mxu0 %v956
    %v958 = vand.u32 %v34, 4294901760
    %v959 = vsub.f32 %v34, %v958
    %v960 = vand.u32 %v959, 4294901760
    %961 = vmatpush1.msra.mxu0 %v960
    %v962 = vand.u32 %v37, 4294901760
    %v963 = vsub.f32 %v37, %v962
    %v964 = vand.u32 %v963, 4294901760
    %965 = vmatprep.subr.mxu0 %v964
    %v966 = vand.u32 %v36, 4294901760
    %v967 = vsub.f32 %v36, %v966
    %v968 = vand.u32 %v967, 4294901760
    %969 = vmatpush1.msra.mxu0 %v968
    %v970 = vand.u32 %v39, 4294901760
    %v971 = vsub.f32 %v39, %v970
    %v972 = vand.u32 %v971, 4294901760
    %973 = vmatprep.subr.mxu0 %v972
    %v974 = vand.u32 %v38, 4294901760
    %v975 = vsub.f32 %v38, %v974
    %v976 = vand.u32 %v975, 4294901760
    %977 = vmatpush1.msra.mxu0 %v976
    %v978 = vand.u32 %v41, 4294901760
    %v979 = vsub.f32 %v41, %v978
    %v980 = vand.u32 %v979, 4294901760
    %981 = vmatprep.subr.mxu0 %v980
    %v982 = vand.u32 %v40, 4294901760
    %v983 = vsub.f32 %v40, %v982
    %v984 = vand.u32 %v983, 4294901760
    %985 = vmatpush1.msra.mxu0 %v984
    %v986 = vand.u32 %v43, 4294901760
    %v987 = vsub.f32 %v43, %v986
    %v988 = vand.u32 %v987, 4294901760
    %989 = vmatprep.subr.mxu0 %v988
    %v990 = vand.u32 %v42, 4294901760
    %v991 = vsub.f32 %v42, %v990
    %v992 = vand.u32 %v991, 4294901760
    %993 = vmatpush1.msra.mxu0 %v992
    %v994 = vand.u32 %v45, 4294901760
    %v995 = vsub.f32 %v45, %v994
    %v996 = vand.u32 %v995, 4294901760
    %997 = vmatprep.subr.mxu0 %v996
    %v998 = vand.u32 %v44, 4294901760
    %v999 = vsub.f32 %v44, %v998
    %v1000 = vand.u32 %v999, 4294901760
    %1001 = vmatpush1.msra.mxu0 %v1000
    %v1002 = vand.u32 %v47, 4294901760
    %v1003 = vsub.f32 %v47, %v1002
    %v1004 = vand.u32 %v1003, 4294901760
    %1005 = vmatprep.subr.mxu0 %v1004
    %v1006 = vand.u32 %v46, 4294901760
    %v1007 = vsub.f32 %v46, %v1006
    %v1008 = vand.u32 %v1007, 4294901760
    %1009 = vmatpush1.msra.mxu0 %v1008
    %v1010 = vand.u32 %v49, 4294901760
    %v1011 = vsub.f32 %v49, %v1010
    %v1012 = vand.u32 %v1011, 4294901760
    %1013 = vmatprep.subr.mxu0 %v1012
    %v1014 = vand.u32 %v48, 4294901760
    %v1015 = vsub.f32 %v48, %v1014
    %v1016 = vand.u32 %v1015, 4294901760
    %1017 = vmatpush1.msra.mxu0 %v1016
    %v1018 = vand.u32 %v51, 4294901760
    %v1019 = vsub.f32 %v51, %v1018
    %v1020 = vand.u32 %v1019, 4294901760
    %1021 = vmatprep.subr.mxu0 %v1020
    %v1022 = vand.u32 %v50, 4294901760
    %v1023 = vsub.f32 %v50, %v1022
    %v1024 = vand.u32 %v1023, 4294901760
    %1025 = vmatpush1.msra.mxu0 %v1024
    %v1026 = vand.u32 %v53, 4294901760
    %v1027 = vsub.f32 %v53, %v1026
    %v1028 = vand.u32 %v1027, 4294901760
    %1029 = vmatprep.subr.mxu0 %v1028
    %v1030 = vand.u32 %v52, 4294901760
    %v1031 = vsub.f32 %v52, %v1030
    %v1032 = vand.u32 %v1031, 4294901760
    %1033 = vmatpush1.msra.mxu0 %v1032
    %v1034 = vand.u32 %v55, 4294901760
    %v1035 = vsub.f32 %v55, %v1034
    %v1036 = vand.u32 %v1035, 4294901760
    %1037 = vmatprep.subr.mxu0 %v1036
    %v1038 = vand.u32 %v54, 4294901760
    %v1039 = vsub.f32 %v54, %v1038
    %v1040 = vand.u32 %v1039, 4294901760
    %1041 = vmatpush1.msra.mxu0 %v1040
    %v1042 = vand.u32 %v57, 4294901760
    %v1043 = vsub.f32 %v57, %v1042
    %v1044 = vand.u32 %v1043, 4294901760
    %1045 = vmatprep.subr.mxu0 %v1044
    %v1046 = vand.u32 %v56, 4294901760
    %v1047 = vsub.f32 %v56, %v1046
    %v1048 = vand.u32 %v1047, 4294901760
    %1049 = vmatpush1.msra.mxu0 %v1048
    %v1050 = vand.u32 %v59, 4294901760
    %v1051 = vsub.f32 %v59, %v1050
    %v1052 = vand.u32 %v1051, 4294901760
    %1053 = vmatprep.subr.mxu0 %v1052
    %v1054 = vand.u32 %v58, 4294901760
    %v1055 = vsub.f32 %v58, %v1054
    %v1056 = vand.u32 %v1055, 4294901760
    %1057 = vmatpush1.msra.mxu0 %v1056
    %v1058 = vand.u32 %v61, 4294901760
    %v1059 = vsub.f32 %v61, %v1058
    %v1060 = vand.u32 %v1059, 4294901760
    %1061 = vmatprep.subr.mxu0 %v1060
    %v1062 = vand.u32 %v60, 4294901760
    %v1063 = vsub.f32 %v60, %v1062
    %v1064 = vand.u32 %v1063, 4294901760
    %1065 = vmatpush1.msra.mxu0 %v1064
    %v1066 = vand.u32 %v63, 4294901760
    %v1067 = vsub.f32 %v63, %v1066
    %v1068 = vand.u32 %v1067, 4294901760
    %1069 = vmatprep.subr.mxu0 %v1068
    %v1070 = vand.u32 %v62, 4294901760
    %v1071 = vsub.f32 %v62, %v1070
    %v1072 = vand.u32 %v1071, 4294901760
    %1073 = vmatpush1.msra.mxu0 %v1072
    %v1074 = vand.u32 %v78, 4294901760
    %v1075 = vsub.f32 %v78, %v1074
    %v1076 = vand.u32 %v1075, 4294901760
    %1077 = vmatprep.subr.mxu0 %v1076
    %v1078 = vand.u32 %v75, 4294901760
    %v1079 = vsub.f32 %v75, %v1078
    %v1080 = vand.u32 %v1079, 4294901760
    %1081 = vmatpush1.msra.mxu0 %v1080
    %1082 = vmatprep.subr.mxu0 0.0
    %1083 = vmatpush1.msra.mxu0 0.0
    %1084 = vmatprep.subr.mxu0 0.0
    %1085 = vmatpush1.msra.mxu0 0.0
    %1086 = vmatprep.subr.mxu0 0.0
    %1087 = vmatpush1.msra.mxu0 0.0
    %1088 = vmatprep.subr.mxu0 0.0
    %1089 = vmatpush1.msra.mxu0 0.0
    %1090 = vmatprep.subr.mxu0 0.0
    %1091 = vmatpush1.msra.mxu0 0.0
    %1092 = vmatprep.subr.mxu0 0.0
    %1093 = vmatpush1.msra.mxu0 0.0
    %1094 = vmatprep.subr.mxu0 0.0
    %1095 = vmatpush1.msra.mxu0 0.0
    %v1096 = vand.u32 %v68, 4294901760
    %1097 = vmatprep.mubr.f32.mxu0 %v1096
    %v1098 = vand.u32 %v12, 4294901760
    %1099 = vmatmul.mubr.f32.gmra.mrb[0].mxu0 %v1098
    %v1100 = vpop.f32.mrb[0].mxu0
    %v1101 = vadd.f32 %v866, %v1100
    %v1102 = vpop.f32.mrb[0].mxu0
    %v1103 = vadd.f32 %v868, %v1102
    %v1104 = vand.u32 %v71, 4294901760
    %1105 = vmatprep.mubr.f32.mxu0 %v1104
    %v1106 = vand.u32 %v14, 4294901760
    %1107 = vmatmul.mubr.f32.gmra.mrb[0].mxu0 %v1106
    %v1108 = vpop.f32.mrb[0].mxu0
    %v1109 = vadd.f32 %v878, %v1108
    %v1110 = vpop.f32.mrb[0].mxu0
    %v1111 = vadd.f32 %v880, %v1110
    %1112 = vdwg.mxu0
    %v1113 = vand.u32 %v17, 4294901760
    %1114 = vmatprep.subr.mxu0 %v1113
    %v1115 = vand.u32 %v16, 4294901760
    %1116 = vmatpush1.msra.mxu0 %v1115
    %v1117 = vand.u32 %v19, 4294901760
    %1118 = vmatprep.subr.mxu0 %v1117
    %v1119 = vand.u32 %v18, 4294901760
    %1120 = vmatpush1.msra.mxu0 %v1119
    %v1121 = vand.u32 %v21, 4294901760
    %1122 = vmatprep.subr.mxu0 %v1121
    %v1123 = vand.u32 %v20, 4294901760
    %1124 = vmatpush1.msra.mxu0 %v1123
    %v1125 = vand.u32 %v23, 4294901760
    %1126 = vmatprep.subr.mxu0 %v1125
    %v1127 = vand.u32 %v22, 4294901760
    %1128 = vmatpush1.msra.mxu0 %v1127
    %v1129 = vand.u32 %v25, 4294901760
    %1130 = vmatprep.subr.mxu0 %v1129
    %v1131 = vand.u32 %v24, 4294901760
    %1132 = vmatpush1.msra.mxu0 %v1131
    %v1133 = vand.u32 %v27, 4294901760
    %1134 = vmatprep.subr.mxu0 %v1133
    %v1135 = vand.u32 %v26, 4294901760
    %1136 = vmatpush1.msra.mxu0 %v1135
    %v1137 = vand.u32 %v29, 4294901760
    %1138 = vmatprep.subr.mxu0 %v1137
    %v1139 = vand.u32 %v28, 4294901760
    %1140 = vmatpush1.msra.mxu0 %v1139
    %v1141 = vand.u32 %v31, 4294901760
    %1142 = vmatprep.subr.mxu0 %v1141
    %v1143 = vand.u32 %v30, 4294901760
    %1144 = vmatpush1.msra.mxu0 %v1143
    %v1145 = vand.u32 %v33, 4294901760
    %1146 = vmatprep.subr.mxu0 %v1145
    %v1147 = vand.u32 %v32, 4294901760
    %1148 = vmatpush1.msra.mxu0 %v1147
    %v1149 = vand.u32 %v35, 4294901760
    %1150 = vmatprep.subr.mxu0 %v1149
    %v1151 = vand.u32 %v34, 4294901760
    %1152 = vmatpush1.msra.mxu0 %v1151
    %v1153 = vand.u32 %v37, 4294901760
    %1154 = vmatprep.subr.mxu0 %v1153
    %v1155 = vand.u32 %v36, 4294901760
    %1156 = vmatpush1.msra.mxu0 %v1155
    %v1157 = vand.u32 %v39, 4294901760
    %1158 = vmatprep.subr.mxu0 %v1157
    %v1159 = vand.u32 %v38, 4294901760
    %1160 = vmatpush1.msra.mxu0 %v1159
    %v1161 = vand.u32 %v41, 4294901760
    %1162 = vmatprep.subr.mxu0 %v1161
    %v1163 = vand.u32 %v40, 4294901760
    %1164 = vmatpush1.msra.mxu0 %v1163
    %v1165 = vand.u32 %v43, 4294901760
    %1166 = vmatprep.subr.mxu0 %v1165
    %v1167 = vand.u32 %v42, 4294901760
    %1168 = vmatpush1.msra.mxu0 %v1167
    %v1169 = vand.u32 %v45, 4294901760
    %1170 = vmatprep.subr.mxu0 %v1169
    %v1171 = vand.u32 %v44, 4294901760
    %1172 = vmatpush1.msra.mxu0 %v1171
    %v1173 = vand.u32 %v47, 4294901760
    %1174 = vmatprep.subr.mxu0 %v1173
    %v1175 = vand.u32 %v46, 4294901760
    %1176 = vmatpush1.msra.mxu0 %v1175
    %v1177 = vand.u32 %v49, 4294901760
    %1178 = vmatprep.subr.mxu0 %v1177
    %v1179 = vand.u32 %v48, 4294901760
    %1180 = vmatpush1.msra.mxu0 %v1179
    %v1181 = vand.u32 %v51, 4294901760
    %1182 = vmatprep.subr.mxu0 %v1181
    %v1183 = vand.u32 %v50, 4294901760
    %1184 = vmatpush1.msra.mxu0 %v1183
    %v1185 = vand.u32 %v53, 4294901760
    %1186 = vmatprep.subr.mxu0 %v1185
    %v1187 = vand.u32 %v52, 4294901760
    %1188 = vmatpush1.msra.mxu0 %v1187
    %v1189 = vand.u32 %v55, 4294901760
    %1190 = vmatprep.subr.mxu0 %v1189
    %v1191 = vand.u32 %v54, 4294901760
    %1192 = vmatpush1.msra.mxu0 %v1191
    %v1193 = vand.u32 %v57, 4294901760
    %1194 = vmatprep.subr.mxu0 %v1193
    %v1195 = vand.u32 %v56, 4294901760
    %1196 = vmatpush1.msra.mxu0 %v1195
    %v1197 = vand.u32 %v59, 4294901760
    %1198 = vmatprep.subr.mxu0 %v1197
    %v1199 = vand.u32 %v58, 4294901760
    %1200 = vmatpush1.msra.mxu0 %v1199
    %v1201 = vand.u32 %v61, 4294901760
    %1202 = vmatprep.subr.mxu0 %v1201
    %v1203 = vand.u32 %v60, 4294901760
    %1204 = vmatpush1.msra.mxu0 %v1203
    %v1205 = vand.u32 %v63, 4294901760
    %1206 = vmatprep.subr.mxu0 %v1205
    %v1207 = vand.u32 %v62, 4294901760
    %1208 = vmatpush1.msra.mxu0 %v1207
    %v1209 = vand.u32 %v78, 4294901760
    %1210 = vmatprep.subr.mxu0 %v1209
    %v1211 = vand.u32 %v75, 4294901760
    %1212 = vmatpush1.msra.mxu0 %v1211
    %1213 = vmatprep.subr.mxu0 0.0
    %1214 = vmatpush1.msra.mxu0 0.0
    %1215 = vmatprep.subr.mxu0 0.0
    %1216 = vmatpush1.msra.mxu0 0.0
    %1217 = vmatprep.subr.mxu0 0.0
    %1218 = vmatpush1.msra.mxu0 0.0
    %1219 = vmatprep.subr.mxu0 0.0
    %1220 = vmatpush1.msra.mxu0 0.0
    %1221 = vmatprep.subr.mxu0 0.0
    %1222 = vmatpush1.msra.mxu0 0.0
    %1223 = vmatprep.subr.mxu0 0.0
    %1224 = vmatpush1.msra.mxu0 0.0
    %1225 = vmatprep.subr.mxu0 0.0
    %1226 = vmatpush1.msra.mxu0 0.0
    %v1227 = vand.u32 %v68, 4294901760
    %1228 = vmatprep.mubr.f32.mxu0 %v1227
    %v1229 = vand.u32 %v12, 4294901760
    %1230 = vmatmul.mubr.f32.gmra.mrb[0].mxu0 %v1229
    %v1231 = vpop.f32.mrb[0].mxu0
    %v1232 = vadd.f32 %v1101, %v1231
    %v1233 = vpop.f32.mrb[0].mxu0
    %v1234 = vadd.f32 %v1103, %v1233
    %v1235 = vand.u32 %v71, 4294901760
    %1236 = vmatprep.mubr.f32.mxu0 %v1235
    %v1237 = vand.u32 %v14, 4294901760
    %1238 = vmatmul.mubr.f32.gmra.mrb[0].mxu0 %v1237
    %v1239 = vpop.f32.mrb[0].mxu0
    %v1240 = vadd.f32 %v1109, %v1239
    %v1241 = vpop.f32.mrb[0].mxu0
    %v1242 = vadd.f32 %v1111, %v1241
    %1243 = vdwg.mxu0
    %v1244 = vmul.f32 %v1232, %v1232
    %v1245 = vmul.f32 %v1234, %v1234
    %v1246 = vmul.f32 %v1240, %v1240
    %v1247 = vmul.f32 %v1242, %v1242
    %v1248 = vadd.f32 %v1244, %v1245
    %v1249 = vadd.f32 %v1248, %v1246
    %v1250 = vadd.f32 %v1249, %v1247
    %1251 = vadd.xlane.f32.xlu0 %v1250
    %v1252 = vpop.xlane.xlu0 %1251
    %v1253 = vrot.slane %v1252, 4
    %v1254 = vadd.f32 %v1252, %v1253
    %v1255 = vrot.slane %v1254, 2
    %v1256 = vadd.f32 %v1254, %v1255
    %v1257 = vrot.slane %v1256, 1
    %v1258 = vadd.f32 %v1256, %v1257
    %s1259 = vtos %v1258
    %v1260 = vmul.f32 %v12, %v12
    %v1261 = vmul.f32 %v13, %v13
    %v1262 = vmul.f32 %v14, %v14
    %v1263 = vmul.f32 %v15, %v15
    %v1264 = vsel %vm66, %v1261, 0.0
    %v1265 = vadd.f32 %v1260, %v1264
    %v1266 = vadd.f32 %v1265, %v1262
    %v1267 = vsel %vm66, %v1263, 0.0
    %v1268 = vadd.f32 %v1266, %v1267
    %1269 = vadd.xlane.f32.xlu0 %v1268
    %v1270 = vpop.xlane.xlu0 %1269
    %v1271 = vrot.slane %v1270, 4
    %v1272 = vadd.f32 %v1270, %v1271
    %v1273 = vrot.slane %v1272, 2
    %v1274 = vadd.f32 %v1272, %v1273
    %v1275 = vrot.slane %v1274, 1
    %v1276 = vadd.f32 %v1274, %v1275
    %s1277 = vtos %v1276
    %v1278 = vstv %s1277
    %v1279 = vrcp.pop %v1278
    %s1280 = vtos %v1279
    %s1281 = smul.f32 %s1259, %s1280
    %s1282 = scalar_lea.smem [#allocation2], 0
    %1283 = sst [smem:[%s1282]] %s1281
    // Predicated region
    $region10: #{laplace_l2norm.1} parent=1 // pred_check
      _
    $region11: #{laplace_l2norm.1} parent=1 // pred_check_branch
      %1285 = sbr.rel (0) target = $region13
    $region12: #{laplace_l2norm.1} parent=1 // pred_region
      %s1287 = ssub.s32 16, 16
      %1288 = vsyncadd [#allocation3], %s1287
      %1291 = dma.smem_to_hbm [#allocation2], 16, %s2, [#allocation3]
    $region13: #{laplace_l2norm.1} parent=1 // pred_fallthru
      _
    // Predicated region
    $region14: #{laplace_l2norm.1} parent=1 // pred_check
      _
    $region15: #{laplace_l2norm.1} parent=1 // pred_check_branch
      %1293 = sbr.rel (0) target = $region17
    $region16: #{laplace_l2norm.1} parent=1 // pred_region
      %1294 = dma.done [#allocation3], 16
    $region17: #{laplace_l2norm.1} parent=1 // pred_fallthru
      _
    %1295 = sfence
    %1296 = vsyncpa [#allocation3], 1

</llo_original>
